<compile_context>
chip_gen: v5e
topology: v5e:2x2
jax: 0.10.0
libtpu: 0.0.40
codegen_flags: <defaults>
</compile_context>

<pallas_src>
import functools

import jax
import jax.numpy as jnp
from jax.experimental import pallas as pl
from jax.experimental.pallas import tpu as pltpu


def _round_up(v, m):
    return (v + m - 1) // m * m


def _fused_mlp_kernel(*refs, num_layers, real_out_dims, eps):
    """refs = (x_ref, [w_ref, b_ref, g_ref, beta_ref] * num_layers, o_ref).

    x:   (TM, Din_pad)  f32
    w_i: (Din_pad, Dout_pad) bf16   (already transposed: x @ w)
    b/g/beta_i: (1, Dout_pad) f32
    o:   (TM, Dlast_pad) f32
    """
    x_ref = refs[0]
    o_ref = refs[-1]

    h = x_ref[...].astype(jnp.float32)
    for li in range(num_layers):
        w_ref, b_ref, g_ref, beta_ref = refs[1 + 4 * li: 5 + 4 * li]
        d_real = real_out_dims[li]

        # Linear: bf16 MXU inputs, f32 accumulate.  No transpose in-kernel.
        y = jnp.dot(h.astype(jnp.bfloat16), w_ref[...],
                    preferred_element_type=jnp.float32)
        y = y + b_ref[...]

        d_pad = y.shape[-1]
        padded = d_pad != d_real
        if padded:
            valid = jax.lax.broadcasted_iota(jnp.int32, y.shape, 1) < d_real
            y = jnp.where(valid, y, 0.0)

        # LayerNorm over the REAL feature count (biased variance, torch semantics).
        inv_d = 1.0 / float(d_real)
        mean = jnp.sum(y, axis=-1, keepdims=True) * inv_d
        centered = y - mean
        if padded:
            centered = jnp.where(valid, centered, 0.0)
        var = jnp.sum(centered * centered, axis=-1, keepdims=True) * inv_d

        # Fold gamma into the rsqrt scale (rsqrt -> EUP slot; one fewer VPU multiply).
        scale = jax.lax.rsqrt(var + eps) * g_ref[...]
        h = centered * scale + beta_ref[...]   # padded lanes: gamma=beta=0 -> 0

        if li < num_layers - 1:
            h = jnp.maximum(h, 0.0)

    o_ref[...] = h.astype(o_ref.dtype)


def mlp_block_forward(x, params, *, eps=1e-5):
    """Fused MLPBlock forward.  params: list of (w (Dout,Din), b, gamma, beta)."""
    n, d_in = x.shape
    num_layers = len(params)
    out_dims = [int(w.shape[0]) for (w, _, _, _) in params]

    # Pad feature dims to lane-dense multiples of 128; pad rows to the row tile.
    d_in_pad = _round_up(d_in, 128)
    out_pads = [_round_up(d, 128) for d in out_dims]
    tm = min(128, _round_up(n, 8))
    n_pad = _round_up(n, tm)

    x_p = jnp.pad(x.astype(jnp.float32),
                  ((0, n_pad - n), (0, d_in_pad - d_in)))

    flat_inputs = [x_p]
    in_specs = [pl.BlockSpec((tm, d_in_pad), lambda i: (i, 0))]

    prev_pad, prev_real = d_in_pad, d_in
    weight_bytes = 0
    flops = 0
    for (w, b, g, beta), d_real, d_pad in zip(params, out_dims, out_pads):
        # PyTorch stores (Dout, Din); transpose once -> (Din, Dout), zero-pad, bf16.
        wt = jnp.zeros((prev_pad, d_pad), jnp.bfloat16)
        wt = wt.at[:prev_real, :d_real].set(w.T.astype(jnp.bfloat16))
        b_p = jnp.pad(b.reshape(1, -1).astype(jnp.float32),
                      ((0, 0), (0, d_pad - d_real)))
        g_p = jnp.pad(g.reshape(1, -1).astype(jnp.float32),
                      ((0, 0), (0, d_pad - d_real)))
        beta_p = jnp.pad(beta.reshape(1, -1).astype(jnp.float32),
                         ((0, 0), (0, d_pad - d_real)))
        flat_inputs += [wt, b_p, g_p, beta_p]
        in_specs += [
            pl.BlockSpec((prev_pad, d_pad), lambda i: (0, 0)),  # resident weight
            pl.BlockSpec((1, d_pad), lambda i: (0, 0)),
            pl.BlockSpec((1, d_pad), lambda i: (0, 0)),
            pl.BlockSpec((1, d_pad), lambda i: (0, 0)),
        ]
        weight_bytes += wt.size * 2 + 3 * d_pad * 4
        flops += 2 * n_pad * prev_pad * d_pad
        prev_pad, prev_real = d_pad, d_real

    d_last_pad = prev_pad
    out_specs = pl.BlockSpec((tm, d_last_pad), lambda i: (i, 0))

    act_bytes = n_pad * (d_in_pad + d_last_pad) * 4
    cost = pl.CostEstimate(flops=flops,
                           transcendentals=n_pad * num_layers,
                           bytes_accessed=act_bytes + weight_bytes)

    # Explicit VMEM budget (v7x has 64 MiB physical): double-buffered activation
    # tiles + (double-buffered) resident weights/params + live intermediates.
    vmem_bytes = (2 * tm * (d_in_pad + d_last_pad) * 4
                  + 2 * weight_bytes
                  + tm * sum(out_pads) * 4)
    vmem_limit = int(min(max(2 * vmem_bytes + (4 << 20), 16 << 20), 64 << 20))
    # TODO(synk): for layers whose (Din_pad x Dout_pad) weight exceeds this budget,
    # add a K grid axis ("arbitrary", last) with a f32 accumulator (P3 pattern).

    kernel = functools.partial(_fused_mlp_kernel,
                               num_layers=num_layers,
                               real_out_dims=tuple(out_dims),
                               eps=eps)

    out_p = pl.pallas_call(
        kernel,
        out_shape=jax.ShapeDtypeStruct((n_pad, d_last_pad), x.dtype),
        grid=(n_pad // tm,),
        in_specs=in_specs,
        out_specs=out_specs,
        compiler_params=pltpu.CompilerParams(
            dimension_semantics=("parallel",),
            vmem_limit_bytes=vmem_limit),
        cost_estimate=cost,
    )(*flat_inputs)

    return out_p[:n, :out_dims[-1]]


def init_mlp_params(key, input_dim, output_dims):
    """Parameters mirroring the PyTorch module (Linear + LayerNorm per layer)."""
    params = []
    prev = input_dim
    for d in output_dims:
        key, kw, kb = jax.random.split(key, 3)
        bound = float(prev) ** -0.5
        w = jax.random.uniform(kw, (d, prev), jnp.float32, -bound, bound)
        b = jax.random.uniform(kb, (d,), jnp.float32, -bound, bound)
        gamma = jnp.ones((d,), jnp.float32)
        beta = jnp.zeros((d,), jnp.float32)
        params.append((w, b, gamma, beta))
        prev = d
    return params


def mlp_block_reference(x, params, *, eps=1e-5, mxu_dtype=jnp.float32):
    """Pure-JAX reference (Linear -> LayerNorm -> ReLU).  mxu_dtype lets us build a
    precision-matched reference (bf16 MXU inputs, f32 accumulation) for tight checks."""
    h = x.astype(jnp.float32)
    nl = len(params)
    for i, (w, b, g, beta) in enumerate(params):
        y = jnp.dot(h.astype(mxu_dtype), w.T.astype(mxu_dtype),
                    preferred_element_type=jnp.float32) + b
        mean = jnp.mean(y, axis=-1, keepdims=True)
        var = jnp.mean((y - mean) ** 2, axis=-1, keepdims=True)
        y = (y - mean) * jax.lax.rsqrt(var + eps) * g + beta
        if i < nl - 1:
            y = jnp.maximum(y, 0.0)
        h = y
    return h


if __name__ == "__main__":
    key = jax.random.PRNGKey(0)
    kx, kp = jax.random.split(key)

    batch = 8
    input_dim = 32
    output_dims = (64, 32)

    x = jax.random.normal(kx, (batch, input_dim), jnp.float32)
    params = init_mlp_params(kp, input_dim, output_dims)

    out = jax.block_until_ready(mlp_block_forward(x, params))
    assert out.shape == (batch, output_dims[-1])

    # Tight check vs a precision-matched reference (bf16 MXU inputs, f32 LN — same
    # numerics as the kernel).
    ref_matched = mlp_block_reference(x, params, mxu_dtype=jnp.bfloat16)
    assert jnp.allclose(out, ref_matched, rtol=2e-3, atol=2e-3), "mismatch vs matched ref"

    # Loose sanity check vs full-f32 math (only bf16 MXU rounding differs).
    ref_f32 = mlp_block_reference(x, params, mxu_dtype=jnp.float32)
    assert jnp.allclose(out, ref_f32, rtol=1e-1, atol=1e-1), "mismatch vs f32 ref"

    print("KERNEL_OK")
</pallas_src>

<mosaic_0001>
module attributes {stable_mosaic.version = 11 : i64} {
  func.func @_fused_mlp_kernel(%arg0: i32, %arg1: memref<8x128xf32, #tpu.memory_space<vmem>>, %arg2: memref<128x128xbf16, #tpu.memory_space<vmem>>, %arg3: memref<1x128xf32, #tpu.memory_space<vmem>>, %arg4: memref<1x128xf32, #tpu.memory_space<vmem>>, %arg5: memref<1x128xf32, #tpu.memory_space<vmem>>, %arg6: memref<128x128xbf16, #tpu.memory_space<vmem>>, %arg7: memref<1x128xf32, #tpu.memory_space<vmem>>, %arg8: memref<1x128xf32, #tpu.memory_space<vmem>>, %arg9: memref<1x128xf32, #tpu.memory_space<vmem>>, %arg10: memref<8x128xf32, #tpu.memory_space<vmem>>) attributes {dimension_semantics = [#tpu.dimension_semantics<parallel>], iteration_bounds = array<i64: 1>, scalar_prefetch = 0 : i64, scratch_operands = 0 : i64, tpu.core_type = #tpu.core_type<tc>, window_params = [{transform_indices = @transform_0, window_bounds = array<i64: 8, 128>}, {pipeline_mode = #tpu.pipeline_mode<synchronous>, transform_indices = @transform_1, window_bounds = array<i64: 128, 128>}, {pipeline_mode = #tpu.pipeline_mode<synchronous>, transform_indices = @transform_2, window_bounds = array<i64: 1, 128>}, {pipeline_mode = #tpu.pipeline_mode<synchronous>, transform_indices = @transform_3, window_bounds = array<i64: 1, 128>}, {pipeline_mode = #tpu.pipeline_mode<synchronous>, transform_indices = @transform_4, window_bounds = array<i64: 1, 128>}, {pipeline_mode = #tpu.pipeline_mode<synchronous>, transform_indices = @transform_5, window_bounds = array<i64: 128, 128>}, {pipeline_mode = #tpu.pipeline_mode<synchronous>, transform_indices = @transform_6, window_bounds = array<i64: 1, 128>}, {pipeline_mode = #tpu.pipeline_mode<synchronous>, transform_indices = @transform_7, window_bounds = array<i64: 1, 128>}, {pipeline_mode = #tpu.pipeline_mode<synchronous>, transform_indices = @transform_8, window_bounds = array<i64: 1, 128>}, {transform_indices = @transform_9, window_bounds = array<i64: 8, 128>}]} {
    %c0 = arith.constant 0 : index
    %c0_0 = arith.constant 0 : index
    %0 = vector.load %arg1[%c0, %c0_0] : memref<8x128xf32, #tpu.memory_space<vmem>>, vector<8x128xf32>
    %1 = arith.truncf %0 : vector<8x128xf32> to vector<8x128xbf16>
    %c0_1 = arith.constant 0 : index
    %c0_2 = arith.constant 0 : index
    %2 = vector.load %arg2[%c0_1, %c0_2] : memref<128x128xbf16, #tpu.memory_space<vmem>>, vector<128x128xbf16>
    %cst = arith.constant dense<0.000000e+00> : vector<8x128xf32>
    %3 = tpu.matmul %1, %2, %cst {dimension_numbers = #tpu.dot_dimension_numbers<[1], [0], [0], [1], [0, 0, 1, 1], [], []>} : vector<8x128xbf16>, vector<128x128xbf16>, vector<8x128xf32> -> vector<8x128xf32>
    %c0_3 = arith.constant 0 : index
    %c0_4 = arith.constant 0 : index
    %4 = vector.load %arg3[%c0_3, %c0_4] : memref<1x128xf32, #tpu.memory_space<vmem>>, vector<1x128xf32>
    %5 = vector.broadcast %4 : vector<1x128xf32> to vector<8x128xf32>
    %6 = arith.addf %3, %5 : vector<8x128xf32>
    %7 = tpu.iota {dimensions = array<i32: 1>} : vector<8x128xi32>
    %c64_i32 = arith.constant 64 : i32
    %8 = vector.broadcast %c64_i32 : i32 to vector<8x128xi32>
    %9 = arith.cmpi slt, %7, %8 : vector<8x128xi32>
    %cst_5 = arith.constant 0.000000e+00 : f32
    %10 = vector.broadcast %cst_5 : f32 to vector<8x128xf32>
    %11 = arith.select %9, %6, %10 : vector<8x128xi1>, vector<8x128xf32>
    %cst_6 = arith.constant dense<0.000000e+00> : vector<8xf32>
    %12 = vector.multi_reduction <add>, %11, %cst_6 [1] : vector<8x128xf32> to vector<8xf32>
    %13 = vector.shape_cast %12 : vector<8xf32> to vector<8x1xf32>
    %cst_7 = arith.constant 1.562500e-02 : f32
    %14 = vector.broadcast %cst_7 : f32 to vector<8x1xf32>
    %15 = arith.mulf %13, %14 : vector<8x1xf32>
    %16 = vector.broadcast %15 : vector<8x1xf32> to vector<8x128xf32>
    %17 = arith.subf %11, %16 : vector<8x128xf32>
    %cst_8 = arith.constant 0.000000e+00 : f32
    %18 = vector.broadcast %cst_8 : f32 to vector<8x128xf32>
    %19 = arith.select %9, %17, %18 : vector<8x128xi1>, vector<8x128xf32>
    %20 = arith.mulf %19, %19 : vector<8x128xf32>
    %cst_9 = arith.constant dense<0.000000e+00> : vector<8xf32>
    %21 = vector.multi_reduction <add>, %20, %cst_9 [1] : vector<8x128xf32> to vector<8xf32>
    %22 = vector.shape_cast %21 : vector<8xf32> to vector<8x1xf32>
    %cst_10 = arith.constant 1.562500e-02 : f32
    %23 = vector.broadcast %cst_10 : f32 to vector<8x1xf32>
    %24 = arith.mulf %22, %23 : vector<8x1xf32>
    %cst_11 = arith.constant 9.99999974E-6 : f32
    %25 = vector.broadcast %cst_11 : f32 to vector<8x1xf32>
    %26 = arith.addf %24, %25 : vector<8x1xf32>
    %27 = math.rsqrt %26 : vector<8x1xf32>
    %c0_12 = arith.constant 0 : index
    %c0_13 = arith.constant 0 : index
    %28 = vector.load %arg4[%c0_12, %c0_13] : memref<1x128xf32, #tpu.memory_space<vmem>>, vector<1x128xf32>
    %29 = vector.broadcast %27 : vector<8x1xf32> to vector<8x128xf32>
    %30 = vector.broadcast %28 : vector<1x128xf32> to vector<8x128xf32>
    %31 = arith.mulf %29, %30 : vector<8x128xf32>
    %32 = arith.mulf %19, %31 : vector<8x128xf32>
    %c0_14 = arith.constant 0 : index
    %c0_15 = arith.constant 0 : index
    %33 = vector.load %arg5[%c0_14, %c0_15] : memref<1x128xf32, #tpu.memory_space<vmem>>, vector<1x128xf32>
    %34 = vector.broadcast %33 : vector<1x128xf32> to vector<8x128xf32>
    %35 = arith.addf %32, %34 : vector<8x128xf32>
    %cst_16 = arith.constant 0.000000e+00 : f32
    %36 = vector.broadcast %cst_16 : f32 to vector<8x128xf32>
    %37 = arith.maximumf %35, %36 : vector<8x128xf32>
    %38 = arith.truncf %37 : vector<8x128xf32> to vector<8x128xbf16>
    %c0_17 = arith.constant 0 : index
    %c0_18 = arith.constant 0 : index
    %39 = vector.load %arg6[%c0_17, %c0_18] : memref<128x128xbf16, #tpu.memory_space<vmem>>, vector<128x128xbf16>
    %cst_19 = arith.constant dense<0.000000e+00> : vector<8x128xf32>
    %40 = tpu.matmul %38, %39, %cst_19 {dimension_numbers = #tpu.dot_dimension_numbers<[1], [0], [0], [1], [0, 0, 1, 1], [], []>} : vector<8x128xbf16>, vector<128x128xbf16>, vector<8x128xf32> -> vector<8x128xf32>
    %c0_20 = arith.constant 0 : index
    %c0_21 = arith.constant 0 : index
    %41 = vector.load %arg7[%c0_20, %c0_21] : memref<1x128xf32, #tpu.memory_space<vmem>>, vector<1x128xf32>
    %42 = vector.broadcast %41 : vector<1x128xf32> to vector<8x128xf32>
    %43 = arith.addf %40, %42 : vector<8x128xf32>
    %44 = tpu.iota {dimensions = array<i32: 1>} : vector<8x128xi32>
    %c32_i32 = arith.constant 32 : i32
    %45 = vector.broadcast %c32_i32 : i32 to vector<8x128xi32>
    %46 = arith.cmpi slt, %44, %45 : vector<8x128xi32>
    %cst_22 = arith.constant 0.000000e+00 : f32
    %47 = vector.broadcast %cst_22 : f32 to vector<8x128xf32>
    %48 = arith.select %46, %43, %47 : vector<8x128xi1>, vector<8x128xf32>
    %cst_23 = arith.constant dense<0.000000e+00> : vector<8xf32>
    %49 = vector.multi_reduction <add>, %48, %cst_23 [1] : vector<8x128xf32> to vector<8xf32>
    %50 = vector.shape_cast %49 : vector<8xf32> to vector<8x1xf32>
    %cst_24 = arith.constant 3.125000e-02 : f32
    %51 = vector.broadcast %cst_24 : f32 to vector<8x1xf32>
    %52 = arith.mulf %50, %51 : vector<8x1xf32>
    %53 = vector.broadcast %52 : vector<8x1xf32> to vector<8x128xf32>
    %54 = arith.subf %48, %53 : vector<8x128xf32>
    %cst_25 = arith.constant 0.000000e+00 : f32
    %55 = vector.broadcast %cst_25 : f32 to vector<8x128xf32>
    %56 = arith.select %46, %54, %55 : vector<8x128xi1>, vector<8x128xf32>
    %57 = arith.mulf %56, %56 : vector<8x128xf32>
    %cst_26 = arith.constant dense<0.000000e+00> : vector<8xf32>
    %58 = vector.multi_reduction <add>, %57, %cst_26 [1] : vector<8x128xf32> to vector<8xf32>
    %59 = vector.shape_cast %58 : vector<8xf32> to vector<8x1xf32>
    %cst_27 = arith.constant 3.125000e-02 : f32
    %60 = vector.broadcast %cst_27 : f32 to vector<8x1xf32>
    %61 = arith.mulf %59, %60 : vector<8x1xf32>
    %cst_28 = arith.constant 9.99999974E-6 : f32
    %62 = vector.broadcast %cst_28 : f32 to vector<8x1xf32>
    %63 = arith.addf %61, %62 : vector<8x1xf32>
    %64 = math.rsqrt %63 : vector<8x1xf32>
    %c0_29 = arith.constant 0 : index
    %c0_30 = arith.constant 0 : index
    %65 = vector.load %arg8[%c0_29, %c0_30] : memref<1x128xf32, #tpu.memory_space<vmem>>, vector<1x128xf32>
    %66 = vector.broadcast %64 : vector<8x1xf32> to vector<8x128xf32>
    %67 = vector.broadcast %65 : vector<1x128xf32> to vector<8x128xf32>
    %68 = arith.mulf %66, %67 : vector<8x128xf32>
    %69 = arith.mulf %56, %68 : vector<8x128xf32>
    %c0_31 = arith.constant 0 : index
    %c0_32 = arith.constant 0 : index
    %70 = vector.load %arg9[%c0_31, %c0_32] : memref<1x128xf32, #tpu.memory_space<vmem>>, vector<1x128xf32>
    %71 = vector.broadcast %70 : vector<1x128xf32> to vector<8x128xf32>
    %72 = arith.addf %69, %71 : vector<8x128xf32>
    %c0_33 = arith.constant 0 : index
    %c0_34 = arith.constant 0 : index
    %73 = vector.load %arg10[%c0_33, %c0_34] : memref<8x128xf32, #tpu.memory_space<vmem>>, vector<8x128xf32>
    tpu.vector_store %arg10[%c0_33, %c0_34], %72 {strides = array<i32>} : memref<8x128xf32, #tpu.memory_space<vmem>>, vector<8x128xf32>,
    return
  }
  func.func @transform_0(%arg0: i32) -> (i32, i32) {
    %c0_i32 = arith.constant 0 : i32
    %c0_i32_0 = arith.constant 0 : i32
    return %arg0, %c0_i32 : i32, i32
  }
  func.func @transform_1(%arg0: i32) -> (i32, i32) {
    %c0_i32 = arith.constant 0 : i32
    %c0_i32_0 = arith.constant 0 : i32
    %c0_i32_1 = arith.constant 0 : i32
    return %c0_i32, %c0_i32_0 : i32, i32
  }
  func.func @transform_2(%arg0: i32) -> (i32, i32) {
    %c0_i32 = arith.constant 0 : i32
    %c0_i32_0 = arith.constant 0 : i32
    %c0_i32_1 = arith.constant 0 : i32
    return %c0_i32, %c0_i32_0 : i32, i32
  }
  func.func @transform_3(%arg0: i32) -> (i32, i32) {
    %c0_i32 = arith.constant 0 : i32
    %c0_i32_0 = arith.constant 0 : i32
    %c0_i32_1 = arith.constant 0 : i32
    return %c0_i32, %c0_i32_0 : i32, i32
  }
  func.func @transform_4(%arg0: i32) -> (i32, i32) {
    %c0_i32 = arith.constant 0 : i32
    %c0_i32_0 = arith.constant 0 : i32
    %c0_i32_1 = arith.constant 0 : i32
    return %c0_i32, %c0_i32_0 : i32, i32
  }
  func.func @transform_5(%arg0: i32) -> (i32, i32) {
    %c0_i32 = arith.constant 0 : i32
    %c0_i32_0 = arith.constant 0 : i32
    %c0_i32_1 = arith.constant 0 : i32
    return %c0_i32, %c0_i32_0 : i32, i32
  }
  func.func @transform_6(%arg0: i32) -> (i32, i32) {
    %c0_i32 = arith.constant 0 : i32
    %c0_i32_0 = arith.constant 0 : i32
    %c0_i32_1 = arith.constant 0 : i32
    return %c0_i32, %c0_i32_0 : i32, i32
  }
  func.func @transform_7(%arg0: i32) -> (i32, i32) {
    %c0_i32 = arith.constant 0 : i32
    %c0_i32_0 = arith.constant 0 : i32
    %c0_i32_1 = arith.constant 0 : i32
    return %c0_i32, %c0_i32_0 : i32, i32
  }
  func.func @transform_8(%arg0: i32) -> (i32, i32) {
    %c0_i32 = arith.constant 0 : i32
    %c0_i32_0 = arith.constant 0 : i32
    %c0_i32_1 = arith.constant 0 : i32
    return %c0_i32, %c0_i32_0 : i32, i32
  }
  func.func @transform_9(%arg0: i32) -> (i32, i32) {
    %c0_i32 = arith.constant 0 : i32
    %c0_i32_0 = arith.constant 0 : i32
    return %arg0, %c0_i32 : i32, i32
  }
}

</mosaic_0001>

<llo_original>
// kernel: tpu_custom_call.1
$region0: #{tpu_custom_call.1}
  #allocation0 [shape = 'u32[]', space=smem, size = 0x4, offset = 0x4, fixed_abs, tag = 'smem constant byte address 0x4 - core index']
  #allocation1 [shape = 'u32[72,128]{1,0:T(1,128)}', space=vmem, size = 0x9000, scoped, tag = 'internal scratch']
  %s0 = inlined_call_operand.hbm [shape: f32[8,128], index: 0, kind: input, shape index: {}]
  %s1 = inlined_call_operand.hbm [shape: bf16[128,128], index: 1, kind: input, shape index: {}]
  %s2 = inlined_call_operand.vmem [shape: f32[1,128], index: 2, kind: input, shape index: {}]
  %s3 = inlined_call_operand.vmem [shape: f32[1,128], index: 3, kind: input, shape index: {}]
  %s4 = inlined_call_operand.vmem [shape: f32[1,128], index: 4, kind: input, shape index: {}]
  %s5 = inlined_call_operand.hbm [shape: bf16[128,128], index: 5, kind: input, shape index: {}]
  %s6 = inlined_call_operand.vmem [shape: f32[1,128], index: 6, kind: input, shape index: {}]
  %s7 = inlined_call_operand.vmem [shape: f32[1,128], index: 7, kind: input, shape index: {}]
  %s8 = inlined_call_operand.vmem [shape: f32[1,128], index: 8, kind: input, shape index: {}]
  %s9 = inlined_call_operand.hbm [shape: f32[8,128], index: 9, kind: output, shape index: {}]
  %s10 = sld [smem:[#allocation0]]
  $region58: #{tpu_custom_call.1} parent=0
    _
  %s12 = ssub.s32 1, %s10
  %s13 = scalar_select 0, %s12, %s10
  $region1: #{tpu_custom_call.1} parent=0
    #allocation2 [shape = 'u8[4096]{0}', space=vmem, size = 0x1000, scoped, tag = 'input window, operand 0, single buffered']
    #allocation3 [shape = 's32[1]{0}', space=sflag, size = 0x4, scoped, tag = 'scoped memory for tpu_custom_call.1']
    #allocation4 [shape = 's32[1]{0}', space=sflag, size = 0x4, scoped, tag = 'scoped memory for tpu_custom_call.1']
    #allocation5 [shape = 'u8[32768]{0}', space=vmem, size = 0x8000, scoped, tag = 'input window, operand 1, single buffered']
    #allocation6 [shape = 's32[1]{0}', space=sflag, size = 0x4, scoped, tag = 'scoped memory for tpu_custom_call.1']
    #allocation7 [shape = 'u8[32768]{0}', space=vmem, size = 0x8000, scoped, tag = 'input window, operand 5, single buffered']
    #allocation8 [shape = 'u8[4096]{0}', space=vmem, size = 0x1000, scoped, tag = 'output window, operand 0, single buffered']
    %14 = vsyncpa [#allocation3], 0
    %15 = vsyncpa [#allocation6], 0
    %16 = vsyncpa [#allocation4], 0
    // Predicated region
    $region2: #{tpu_custom_call.1} parent=1 // pred_check
      _
    $region3: #{tpu_custom_call.1} parent=1 // pred_check_branch
      %18 = sbr.rel (0) target = $region5
    $region4: #{tpu_custom_call.1} parent=1 // pred_region
      %20 = vsyncadd [#allocation3], 0
      %s22 = sshll.u32 %s0, 4
      %s23 = int_to_ptr.hbm [resolvable:$true] %s22
      %s24 = sshll.u32 [#allocation2], 4
      %s25 = int_to_ptr.vmem [resolvable:$true] %s24
      %27 = dma.hbm_to_vmem [thread:$0]  %s23, 128, %s25, [#allocation3]
    $region5: #{tpu_custom_call.1} parent=1 // pred_fallthru
      _
    // Predicated region
    $region6: #{tpu_custom_call.1} parent=1 // pred_check
      _
    $region7: #{tpu_custom_call.1} parent=1 // pred_check_branch
      %29 = sbr.rel (0) target = $region9
    $region8: #{tpu_custom_call.1} parent=1 // pred_region
      %31 = vsyncadd [#allocation6], 0
      %s32 = sshll.u32 %s1, 4
      %s33 = int_to_ptr.hbm [resolvable:$true] %s32
      %s34 = sshll.u32 [#allocation5], 4
      %s35 = int_to_ptr.vmem [resolvable:$true] %s34
      %40 = dma.hbm_to_vmem [thread:$0]  %s33, 1024, %s35, [#allocation6], 64, 64, 4
    $region9: #{tpu_custom_call.1} parent=1 // pred_fallthru
      _
    // Predicated region
    $region10: #{tpu_custom_call.1} parent=1 // pred_check
      _
    $region11: #{tpu_custom_call.1} parent=1 // pred_check_branch
      %42 = sbr.rel (0) target = $region13
    $region12: #{tpu_custom_call.1} parent=1 // pred_region
      _
    $region13: #{tpu_custom_call.1} parent=1 // pred_fallthru
      _
    // Predicated region
    $region14: #{tpu_custom_call.1} parent=1 // pred_check
      _
    $region15: #{tpu_custom_call.1} parent=1 // pred_check_branch
      %44 = sbr.rel (0) target = $region17
    $region16: #{tpu_custom_call.1} parent=1 // pred_region
      _
    $region17: #{tpu_custom_call.1} parent=1 // pred_fallthru
      _
    // Predicated region
    $region18: #{tpu_custom_call.1} parent=1 // pred_check
      _
    $region19: #{tpu_custom_call.1} parent=1 // pred_check_branch
      %46 = sbr.rel (0) target = $region21
    $region20: #{tpu_custom_call.1} parent=1 // pred_region
      _
    $region21: #{tpu_custom_call.1} parent=1 // pred_fallthru
      _
    // Predicated region
    $region22: #{tpu_custom_call.1} parent=1 // pred_check
      _
    $region23: #{tpu_custom_call.1} parent=1 // pred_check_branch
      %48 = sbr.rel (0) target = $region25
    $region24: #{tpu_custom_call.1} parent=1 // pred_region
      %50 = vsyncadd [#allocation6], 0
      %s51 = sshll.u32 %s5, 4
      %s52 = int_to_ptr.hbm [resolvable:$true] %s51
      %s53 = sshll.u32 [#allocation7], 4
      %s54 = int_to_ptr.vmem [resolvable:$true] %s53
      %59 = dma.hbm_to_vmem [thread:$0]  %s52, 1024, %s54, [#allocation6], 64, 64, 4
    $region25: #{tpu_custom_call.1} parent=1 // pred_fallthru
      _
    // Predicated region
    $region26: #{tpu_custom_call.1} parent=1 // pred_check
      _
    $region27: #{tpu_custom_call.1} parent=1 // pred_check_branch
      %61 = sbr.rel (0) target = $region29
    $region28: #{tpu_custom_call.1} parent=1 // pred_region
      _
    $region29: #{tpu_custom_call.1} parent=1 // pred_fallthru
      _
    // Predicated region
    $region30: #{tpu_custom_call.1} parent=1 // pred_check
      _
    $region31: #{tpu_custom_call.1} parent=1 // pred_check_branch
      %63 = sbr.rel (0) target = $region33
    $region32: #{tpu_custom_call.1} parent=1 // pred_region
      _
    $region33: #{tpu_custom_call.1} parent=1 // pred_fallthru
      _
    // Predicated region
    $region34: #{tpu_custom_call.1} parent=1 // pred_check
      _
    $region35: #{tpu_custom_call.1} parent=1 // pred_check_branch
      %65 = sbr.rel (0) target = $region37
    $region36: #{tpu_custom_call.1} parent=1 // pred_region
      _
    $region37: #{tpu_custom_call.1} parent=1 // pred_fallthru
      _
    // Predicated region
    $region38: #{tpu_custom_call.1} parent=1 // pred_check
      _
    $region39: #{tpu_custom_call.1} parent=1 // pred_check_branch
      %67 = sbr.rel (0) target = $region41
    $region40: #{tpu_custom_call.1} parent=1 // pred_region
      %69 = dma.done [#allocation3], 128
    $region41: #{tpu_custom_call.1} parent=1 // pred_fallthru
      _
    // Predicated region
    $region42: #{tpu_custom_call.1} parent=1 // pred_check
      _
    $region43: #{tpu_custom_call.1} parent=1 // pred_check_branch
      %71 = sbr.rel (0) target = $region45
    $region44: #{tpu_custom_call.1} parent=1 // pred_region
      %73 = dma.done [#allocation6], 1024
    $region45: #{tpu_custom_call.1} parent=1 // pred_fallthru
      _
    // Predicated region
    $region46: #{tpu_custom_call.1} parent=1 // pred_check
      _
    $region47: #{tpu_custom_call.1} parent=1 // pred_check_branch
      %75 = sbr.rel (0) target = $region49
    $region48: #{tpu_custom_call.1} parent=1 // pred_region
      %77 = dma.done [#allocation6], 1024
    $region49: #{tpu_custom_call.1} parent=1 // pred_fallthru
      _
    %v78 = vld [vmem:[#allocation2] sm:$0xff]
    %v79 = vpack.c.bf16 %v78, %v78
    %v80 = vld [vmem:[#allocation5] sm:$0xf]
    %v81 = vld [vmem:[#allocation5 + $0x4] sm:$0xf]
    %v82 = vld [vmem:[#allocation5 + $0x8] sm:$0xf]
    %v83 = vld [vmem:[#allocation5 + $0xc] sm:$0xf]
    %v84 = vld [vmem:[#allocation5 + $0x10] sm:$0xf]
    %v85 = vld [vmem:[#allocation5 + $0x14] sm:$0xf]
    %v86 = vld [vmem:[#allocation5 + $0x18] sm:$0xf]
    %v87 = vld [vmem:[#allocation5 + $0x1c] sm:$0xf]
    %v88 = vld [vmem:[#allocation5 + $0x20] sm:$0xf]
    %v89 = vld [vmem:[#allocation5 + $0x24] sm:$0xf]
    %v90 = vld [vmem:[#allocation5 + $0x28] sm:$0xf]
    %v91 = vld [vmem:[#allocation5 + $0x2c] sm:$0xf]
    %v92 = vld [vmem:[#allocation5 + $0x30] sm:$0xf]
    %v93 = vld [vmem:[#allocation5 + $0x34] sm:$0xf]
    %v94 = vld [vmem:[#allocation5 + $0x38] sm:$0xf]
    %v95 = vld [vmem:[#allocation5 + $0x3c] sm:$0xf]
    %v96 = vld [vmem:[%s2] sm:$0x1]
    %v98 = vperm.slane %v96, 0
    %v116 = vunpack.c.l.b16 %v80
    %v117 = vunpack.c.l.b16 %v81
    %v118 = vunpack.c.l.b16 %v82
    %v119 = vunpack.c.l.b16 %v83
    %v120 = vunpack.c.l.b16 %v84
    %v121 = vunpack.c.l.b16 %v85
    %v122 = vunpack.c.l.b16 %v86
    %v123 = vunpack.c.l.b16 %v87
    %v124 = vunpack.c.l.b16 %v88
    %v125 = vunpack.c.l.b16 %v89
    %v126 = vunpack.c.l.b16 %v90
    %v127 = vunpack.c.l.b16 %v91
    %v128 = vunpack.c.l.b16 %v92
    %v129 = vunpack.c.l.b16 %v93
    %v130 = vunpack.c.l.b16 %v94
    %v131 = vunpack.c.l.b16 %v95
    %v132 = vpack.c.b16 %v117, %v116
    %v133 = vpack.c.b16 %v119, %v118
    %v134 = vpack.c.b16 %v121, %v120
    %v135 = vpack.c.b16 %v123, %v122
    %v136 = vpack.c.b16 %v125, %v124
    %v137 = vpack.c.b16 %v127, %v126
    %v138 = vpack.c.b16 %v129, %v128
    %v139 = vpack.c.b16 %v131, %v130
    %148 = vmatpush.bf16.msra.mxu0 %v139
    %149 = vmatpush.bf16.msra.mxu0 %v138
    %150 = vmatpush.bf16.msra.mxu0 %v137
    %151 = vmatpush.bf16.msra.mxu0 %v136
    %152 = vmatpush.bf16.msra.mxu0 %v135
    %153 = vmatpush.bf16.msra.mxu0 %v134
    %154 = vmatpush.bf16.msra.mxu0 %v133
    %155 = vmatpush.bf16.msra.mxu0 %v132
    %156 = vmatmul.bf16.gmra.mxu0 %v79
    %v157 = vpop.f32.mrf.mxu0
    %v158 = vadd.f32 %v98, %v157
    %v159 = vpop.f32.mrf.mxu0
    %160 = vdwg.mxu0
    %v161 = vlaneseq
    %v162 = vand.u32 %v161, 127
    %vm163 = vcmp.lt.s32.totalorder %v162, 64
    %v164 = vsel %vm163, %v158, 0.0
    %165 = vadd.xlane.f32.xlu0 %v164
    %v166 = vpop.xlane.xlu0 %165
    %v167 = vmul.f32 %v166, 0.015625
    %v168 = vsub.f32 %v164, %v167
    %v169 = vsel %vm163, %v168, 0.0
    %v170 = vmul.f32 %v169, %v169
    %171 = vadd.xlane.f32.xlu0 %v170
    %v172 = vpop.xlane.xlu0 %171
    %v173 = vmul.f32 %v172, 0.015625
    %v174 = vadd.f32 %v173, 1e-05
    %v175 = vrsqrt.pop %v174
    %v176 = vmul.f32 %v175, %v174
    %v177 = vmul.f32 %v176, %v175
    %v178 = vmul.f32 0.5, %v177
    %v179 = vsub.f32 1.5, %v178
    %v180 = vmul.f32 %v175, %v179
    %vm181 = vweird.f32 %v174
    %vm182 = vweird.f32 %v175
    %vm183 = vmor %vm181, %vm182
    %v184 = vsel %vm183, %v175, %v180
    %v185 = vld [vmem:[%s3] sm:$0x1]
    %v187 = vperm.slane %v185, 0
    %v189 = vmul.f32 %v184, %v187
    %v190 = vmul.f32 %v169, %v189
    %v191 = vld [vmem:[%s4] sm:$0x1]
    %v193 = vperm.slane %v191, 0
    %v195 = vadd.f32 %v190, %v193
    %v196 = vmax.f32 %v195, 0.0
    %v197 = vpack.c.bf16 %v196, %v196
    %v198 = vld [vmem:[#allocation7] sm:$0xf]
    %v199 = vld [vmem:[#allocation7 + $0x4] sm:$0xf]
    %v200 = vld [vmem:[#allocation7 + $0x8] sm:$0xf]
    %v201 = vld [vmem:[#allocation7 + $0xc] sm:$0xf]
    %v202 = vld [vmem:[#allocation7 + $0x10] sm:$0xf]
    %v203 = vld [vmem:[#allocation7 + $0x14] sm:$0xf]
    %v204 = vld [vmem:[#allocation7 + $0x18] sm:$0xf]
    %v205 = vld [vmem:[#allocation7 + $0x1c] sm:$0xf]
    %v206 = vld [vmem:[#allocation7 + $0x20] sm:$0xf]
    %v207 = vld [vmem:[#allocation7 + $0x24] sm:$0xf]
    %v208 = vld [vmem:[#allocation7 + $0x28] sm:$0xf]
    %v209 = vld [vmem:[#allocation7 + $0x2c] sm:$0xf]
    %v210 = vld [vmem:[#allocation7 + $0x30] sm:$0xf]
    %v211 = vld [vmem:[#allocation7 + $0x34] sm:$0xf]
    %v212 = vld [vmem:[#allocation7 + $0x38] sm:$0xf]
    %v213 = vld [vmem:[#allocation7 + $0x3c] sm:$0xf]
    %v214 = vld [vmem:[%s6] sm:$0x1]
    %v216 = vperm.slane %v214, 0
    %v234 = vunpack.c.l.b16 %v198
    %v235 = vunpack.c.l.b16 %v199
    %v236 = vunpack.c.l.b16 %v200
    %v237 = vunpack.c.l.b16 %v201
    %v238 = vunpack.c.l.b16 %v202
    %v239 = vunpack.c.l.b16 %v203
    %v240 = vunpack.c.l.b16 %v204
    %v241 = vunpack.c.l.b16 %v205
    %v242 = vunpack.c.l.b16 %v206
    %v243 = vunpack.c.l.b16 %v207
    %v244 = vunpack.c.l.b16 %v208
    %v245 = vunpack.c.l.b16 %v209
    %v246 = vunpack.c.l.b16 %v210
    %v247 = vunpack.c.l.b16 %v211
    %v248 = vunpack.c.l.b16 %v212
    %v249 = vunpack.c.l.b16 %v213
    %v250 = vpack.c.b16 %v235, %v234
    %v251 = vpack.c.b16 %v237, %v236
    %v252 = vpack.c.b16 %v239, %v238
    %v253 = vpack.c.b16 %v241, %v240
    %v254 = vpack.c.b16 %v243, %v242
    %v255 = vpack.c.b16 %v245, %v244
    %v256 = vpack.c.b16 %v247, %v246
    %v257 = vpack.c.b16 %v249, %v248
    %266 = vmatpush.bf16.msra.mxu0 %v257
    %267 = vmatpush.bf16.msra.mxu0 %v256
    %268 = vmatpush.bf16.msra.mxu0 %v255
    %269 = vmatpush.bf16.msra.mxu0 %v254
    %270 = vmatpush.bf16.msra.mxu0 %v253
    %271 = vmatpush.bf16.msra.mxu0 %v252
    %272 = vmatpush.bf16.msra.mxu0 %v251
    %273 = vmatpush.bf16.msra.mxu0 %v250
    %274 = vmatmul.bf16.gmra.mxu0 %v197
    %v275 = vpop.f32.mrf.mxu0
    %v276 = vadd.f32 %v216, %v275
    %v277 = vpop.f32.mrf.mxu0
    %278 = vdwg.mxu0
    %vm279 = vcmp.lt.s32.totalorder %v162, 32
    %v280 = vsel %vm279, %v276, 0.0
    %281 = vadd.xlane.f32.xlu0 %v280
    %v282 = vpop.xlane.xlu0 %281
    %v283 = vmul.f32 %v282, 0.03125
    %v284 = vsub.f32 %v280, %v283
    %v285 = vsel %vm279, %v284, 0.0
    %v286 = vmul.f32 %v285, %v285
    %287 = vadd.xlane.f32.xlu0 %v286
    %v288 = vpop.xlane.xlu0 %287
    %v289 = vmul.f32 %v288, 0.03125
    %v290 = vadd.f32 %v289, 1e-05
    %v291 = vrsqrt.pop %v290
    %v292 = vmul.f32 %v291, %v290
    %v293 = vmul.f32 %v292, %v291
    %v294 = vmul.f32 0.5, %v293
    %v295 = vsub.f32 1.5, %v294
    %v296 = vmul.f32 %v291, %v295
    %vm297 = vweird.f32 %v290
    %vm298 = vweird.f32 %v291
    %vm299 = vmor %vm297, %vm298
    %v300 = vsel %vm299, %v291, %v296
    %v301 = vld [vmem:[%s7] sm:$0x1]
    %v303 = vperm.slane %v301, 0
    %v305 = vmul.f32 %v300, %v303
    %v306 = vmul.f32 %v285, %v305
    %v307 = vld [vmem:[%s8] sm:$0x1]
    %v309 = vperm.slane %v307, 0
    %v311 = vadd.f32 %v306, %v309
    %312 = vst [vmem:[#allocation8] sm:$0xff] %v311
    // Predicated region
    $region50: #{tpu_custom_call.1} parent=1 // pred_check
      _
    $region51: #{tpu_custom_call.1} parent=1 // pred_check_branch
      %314 = sbr.rel (0) target = $region53
    $region52: #{tpu_custom_call.1} parent=1 // pred_region
      %316 = vsyncadd [#allocation4], 0
      %s318 = sshll.u32 [#allocation8], 4
      %s319 = int_to_ptr.vmem [resolvable:$true] %s318
      %s320 = sshll.u32 %s9, 4
      %s321 = int_to_ptr.hbm [resolvable:$true] %s320
      %323 = dma.vmem_to_hbm [thread:$0]  %s319, 128, %s321, [#allocation4]
    $region53: #{tpu_custom_call.1} parent=1 // pred_fallthru
      _
    // Predicated region
    $region54: #{tpu_custom_call.1} parent=1 // pred_check
      _
    $region55: #{tpu_custom_call.1} parent=1 // pred_check_branch
      %325 = sbr.rel (0) target = $region57
    $region56: #{tpu_custom_call.1} parent=1 // pred_region
      %327 = dma.done [#allocation4], 128
    $region57: #{tpu_custom_call.1} parent=1 // pred_fallthru
      _
    %328 = vsyncpa [#allocation3], 1
    %329 = vsyncpa [#allocation6], 1
    %330 = vsyncpa [#allocation4], 1

</llo_original>
